<compile_context>
chip_gen: v7x
topology: tpu7x:2x2x1
jax: 0.10.0
libtpu: 0.0.40
codegen_flags: <defaults>
</compile_context>

<pallas_src>
import jax
import jax.numpy as jnp
from jax.experimental import pallas as pl
from jax.experimental.pallas import tpu as pltpu


_MAX_TILE = 512   # batch rows per tile; ~85% of HBM roofline per tiling sweep


def _mlp_kernel(e0_ref, eg_ref, le_ref,
                w1a_ref, w1b_ref, w1c_ref, b1_ref,
                w2_ref, b2_ref,
                w3_ref, b3_ref,
                w4_ref, b4_ref,
                w5_ref, b5_ref,
                o_ref):
    """One batch tile of the 5-layer MLP; weights resident, bf16 MXU, f32 acc."""
    bf16 = jnp.bfloat16
    f32 = jnp.float32

    # Layer 1: concat fused into three partial matmuls (row-split W1).
    h = jnp.dot(e0_ref[...].astype(bf16), w1a_ref[...], preferred_element_type=f32)
    h = h + jnp.dot(eg_ref[...].astype(bf16), w1b_ref[...], preferred_element_type=f32)
    h = h + jnp.dot(le_ref[...].astype(bf16), w1c_ref[...], preferred_element_type=f32)
    h = jnp.maximum(h + b1_ref[...], 0.0)

    # Layers 2-4: bf16 MXU inputs, f32 accumulate, f32 bias-add + ReLU.
    for w_ref, b_ref in ((w2_ref, b2_ref), (w3_ref, b3_ref), (w4_ref, b4_ref)):
        h = jnp.dot(h.astype(bf16), w_ref[...], preferred_element_type=f32)
        h = jnp.maximum(h + b_ref[...], 0.0)

    # Layer 5 (H -> 1): computed as w5 @ h^T so the tile result is a lane-dense
    # (1, TM) row (batch on lanes) -> dense vector stores, no relayout needed.
    out = jax.lax.dot_general(
        w5_ref[...], h.astype(bf16),
        dimension_numbers=(((1,), (1,)), ((), ())),
        preferred_element_type=f32)                        # (1, TM)
    o_ref[...] = (out + b5_ref[...]).astype(o_ref.dtype)


def language_reward_pred(e0, eg, le, params):
    """Fused 'pred' MLP over (B, *) embeddings.  Returns the raw (B,) output."""
    B, im_dim = e0.shape
    lang_dim = le.shape[1]

    # Batch tiling: a single whole-array tile if small, else 512-row tiles
    # (padded so the lane-dense (1, TM) output block stays 128-aligned).
    if B <= _MAX_TILE:
        tm = B
        b_pad = B
    else:
        tm = _MAX_TILE
        b_pad = int(pl.cdiv(B, tm)) * tm
        if b_pad != B:
            pad = ((0, b_pad - B), (0, 0))
            e0 = jnp.pad(e0, pad)
            eg = jnp.pad(eg, pad)
            le = jnp.pad(le, pad)
    grid = (b_pad // tm,)

    in_specs = [
        pl.BlockSpec((tm, im_dim), lambda i: (i, 0)),
        pl.BlockSpec((tm, im_dim), lambda i: (i, 0)),
        pl.BlockSpec((tm, lang_dim), lambda i: (i, 0)),
    ]
    # Weights / biases: full-array blocks with a constant index -> stay resident.
    in_specs += [pl.BlockSpec(p.shape, lambda i: (0, 0)) for p in params]

    out_specs = pl.BlockSpec((1, tm), lambda i: (0, i))
    out_shape = jax.ShapeDtypeStruct((1, b_pad), jnp.float32)

    # VMEM budget: resident weights (x2 buffers) + double-buffered activation
    # tiles + output rows + headroom, capped below the v7x 64 MiB physical cap.
    weight_bytes = sum(int(p.size) * p.dtype.itemsize for p in params)
    tile_bytes = tm * (2 * im_dim + lang_dim) * e0.dtype.itemsize + tm * 4
    vmem_limit = int(min(48 * 1024 * 1024,
                         max(16 * 1024 * 1024,
                             2 * weight_bytes + 4 * tile_bytes + (4 << 20))))

    out = pl.pallas_call(
        _mlp_kernel,
        out_shape=out_shape,
        grid=grid,
        in_specs=in_specs,
        out_specs=out_specs,
        compiler_params=pltpu.CompilerParams(
            dimension_semantics=("parallel",),
            vmem_limit_bytes=vmem_limit,
        ),
    )(e0, eg, le, *params)

    return out[0, :B]                      # (B,)


class LanguageRewardJax:
    """JAX/Pallas port of LanguageReward (synthetic deterministic weights)."""

    def __init__(self, ltype, im_dim, hidden_dim, lang_dim, simfunc=None, *, seed=0):
        self.ltype = ltype
        self.sim = simfunc                 # unused in forward (same as torch)
        in_dim = im_dim * 2 + lang_dim
        dims = [in_dim, hidden_dim, hidden_dim, hidden_dim, hidden_dim, 1]

        key = jax.random.PRNGKey(seed)
        layers = []
        for i in range(5):
            key, kw, kb = jax.random.split(key, 3)
            bound = 1.0 / (dims[i] ** 0.5)          # nn.Linear default init range
            w = jax.random.uniform(kw, (dims[i], dims[i + 1]),
                                   minval=-bound, maxval=bound, dtype=jnp.float32)
            b = jax.random.uniform(kb, (1, dims[i + 1]),
                                   minval=-bound, maxval=bound, dtype=jnp.float32)
            layers.append((w, b))

        (w1, b1), (w2, b2), (w3, b3), (w4, b4), (w5, b5) = layers
        # Split W1 row-wise so the concat can be fused into three partial dots.
        w1a = w1[:im_dim].astype(jnp.bfloat16)
        w1b = w1[im_dim:2 * im_dim].astype(jnp.bfloat16)
        w1c = w1[2 * im_dim:].astype(jnp.bfloat16)
        self.params = (
            w1a, w1b, w1c, b1,                                   # b* stay fp32
            w2.astype(jnp.bfloat16), b2,
            w3.astype(jnp.bfloat16), b3,
            w4.astype(jnp.bfloat16), b4,
            w5.reshape(1, hidden_dim).astype(jnp.bfloat16),      # (1, H) row
            b5.reshape(1, 1),                                    # (1, 1) fp32
        )

    def __call__(self, e0, eg, le):
        info = {}
        pred = language_reward_pred(e0, eg, le, self.params)     # (B,)
        return jnp.squeeze(pred), info                           # .squeeze() like torch


def _reference_forward(e0, eg, le, params):
    """Plain-JAX (XLA) reference mirroring the kernel's dtype pipeline."""
    (w1a, w1b, w1c, b1, w2, b2, w3, b3, w4, b4, w5, b5) = params
    bf16, f32 = jnp.bfloat16, jnp.float32
    h = (jnp.dot(e0.astype(bf16), w1a, preferred_element_type=f32)
         + jnp.dot(eg.astype(bf16), w1b, preferred_element_type=f32)
         + jnp.dot(le.astype(bf16), w1c, preferred_element_type=f32))
    h = jnp.maximum(h + b1, 0.0)
    for w, b in ((w2, b2), (w3, b3), (w4, b4)):
        h = jnp.maximum(jnp.dot(h.astype(bf16), w, preferred_element_type=f32) + b, 0.0)
    out = jnp.dot(h.astype(bf16), w5.T, preferred_element_type=f32) + b5   # (B, 1)
    return jnp.squeeze(out)


if __name__ == "__main__":
    # Small shapes consistent with the module's forward.
    B, im_dim, hidden_dim, lang_dim = 8, 32, 32, 32

    key = jax.random.PRNGKey(0)
    k0, kg, kl = jax.random.split(key, 3)
    e0 = jax.random.normal(k0, (B, im_dim), dtype=jnp.float32)
    eg = jax.random.normal(kg, (B, im_dim), dtype=jnp.float32)
    le = jax.random.normal(kl, (B, lang_dim), dtype=jnp.float32)

    model = LanguageRewardJax("lorl", im_dim, hidden_dim, lang_dim, seed=0)
    reward, info = model(e0, eg, le)
    reward = jax.block_until_ready(reward)

    ref = _reference_forward(e0, eg, le, model.params)
    assert reward.shape == (B,), reward.shape
    # bf16 MXU inputs -> loosened tolerance vs the fp32-exact check.
    assert jnp.allclose(reward, ref, atol=2e-2, rtol=2e-2), (reward, ref)

    print("KERNEL_OK")
</pallas_src>

<mosaic_0001>
module attributes {stable_mosaic.version = 11 : i64} {
  func.func @_mlp_kernel(%arg0: i32, %arg1: memref<8x32xf32, #tpu.memory_space<vmem>>, %arg2: memref<8x32xf32, #tpu.memory_space<vmem>>, %arg3: memref<8x32xf32, #tpu.memory_space<vmem>>, %arg4: memref<32x32xbf16, #tpu.memory_space<vmem>>, %arg5: memref<32x32xbf16, #tpu.memory_space<vmem>>, %arg6: memref<32x32xbf16, #tpu.memory_space<vmem>>, %arg7: memref<1x32xf32, #tpu.memory_space<vmem>>, %arg8: memref<32x32xbf16, #tpu.memory_space<vmem>>, %arg9: memref<1x32xf32, #tpu.memory_space<vmem>>, %arg10: memref<32x32xbf16, #tpu.memory_space<vmem>>, %arg11: memref<1x32xf32, #tpu.memory_space<vmem>>, %arg12: memref<32x32xbf16, #tpu.memory_space<vmem>>, %arg13: memref<1x32xf32, #tpu.memory_space<vmem>>, %arg14: memref<1x32xbf16, #tpu.memory_space<vmem>>, %arg15: memref<1x1xf32, #tpu.memory_space<vmem>>, %arg16: memref<1x8xf32, #tpu.memory_space<vmem>>) attributes {dimension_semantics = [#tpu.dimension_semantics<parallel>], iteration_bounds = array<i64: 1>, scalar_prefetch = 0 : i64, scratch_operands = 0 : i64, tpu.core_type = #tpu.core_type<tc>, window_params = [{transform_indices = @transform_0, window_bounds = array<i64: 8, 32>}, {transform_indices = @transform_1, window_bounds = array<i64: 8, 32>}, {transform_indices = @transform_2, window_bounds = array<i64: 8, 32>}, {pipeline_mode = #tpu.pipeline_mode<synchronous>, transform_indices = @transform_3, window_bounds = array<i64: 32, 32>}, {pipeline_mode = #tpu.pipeline_mode<synchronous>, transform_indices = @transform_4, window_bounds = array<i64: 32, 32>}, {pipeline_mode = #tpu.pipeline_mode<synchronous>, transform_indices = @transform_5, window_bounds = array<i64: 32, 32>}, {pipeline_mode = #tpu.pipeline_mode<synchronous>, transform_indices = @transform_6, window_bounds = array<i64: 1, 32>}, {pipeline_mode = #tpu.pipeline_mode<synchronous>, transform_indices = @transform_7, window_bounds = array<i64: 32, 32>}, {pipeline_mode = #tpu.pipeline_mode<synchronous>, transform_indices = @transform_8, window_bounds = array<i64: 1, 32>}, {pipeline_mode = #tpu.pipeline_mode<synchronous>, transform_indices = @transform_9, window_bounds = array<i64: 32, 32>}, {pipeline_mode = #tpu.pipeline_mode<synchronous>, transform_indices = @transform_10, window_bounds = array<i64: 1, 32>}, {pipeline_mode = #tpu.pipeline_mode<synchronous>, transform_indices = @transform_11, window_bounds = array<i64: 32, 32>}, {pipeline_mode = #tpu.pipeline_mode<synchronous>, transform_indices = @transform_12, window_bounds = array<i64: 1, 32>}, {pipeline_mode = #tpu.pipeline_mode<synchronous>, transform_indices = @transform_13, window_bounds = array<i64: 1, 32>}, {pipeline_mode = #tpu.pipeline_mode<synchronous>, transform_indices = @transform_14, window_bounds = array<i64: 1, 1>}, {transform_indices = @transform_15, window_bounds = array<i64: 1, 8>}]} {
    %c0 = arith.constant 0 : index
    %c0_0 = arith.constant 0 : index
    %0 = vector.load %arg1[%c0, %c0_0] : memref<8x32xf32, #tpu.memory_space<vmem>>, vector<8x32xf32>
    %1 = arith.truncf %0 : vector<8x32xf32> to vector<8x32xbf16>
    %c0_1 = arith.constant 0 : index
    %c0_2 = arith.constant 0 : index
    %2 = vector.load %arg4[%c0_1, %c0_2] : memref<32x32xbf16, #tpu.memory_space<vmem>>, vector<32x32xbf16>
    %cst = arith.constant dense<0.000000e+00> : vector<8x32xf32>
    %3 = tpu.matmul %1, %2, %cst {dimension_numbers = #tpu.dot_dimension_numbers<[1], [0], [0], [1], [0, 0, 1, 1], [], []>} : vector<8x32xbf16>, vector<32x32xbf16>, vector<8x32xf32> -> vector<8x32xf32>
    %c0_3 = arith.constant 0 : index
    %c0_4 = arith.constant 0 : index
    %4 = vector.load %arg2[%c0_3, %c0_4] : memref<8x32xf32, #tpu.memory_space<vmem>>, vector<8x32xf32>
    %5 = arith.truncf %4 : vector<8x32xf32> to vector<8x32xbf16>
    %c0_5 = arith.constant 0 : index
    %c0_6 = arith.constant 0 : index
    %6 = vector.load %arg5[%c0_5, %c0_6] : memref<32x32xbf16, #tpu.memory_space<vmem>>, vector<32x32xbf16>
    %cst_7 = arith.constant dense<0.000000e+00> : vector<8x32xf32>
    %7 = tpu.matmul %5, %6, %cst_7 {dimension_numbers = #tpu.dot_dimension_numbers<[1], [0], [0], [1], [0, 0, 1, 1], [], []>} : vector<8x32xbf16>, vector<32x32xbf16>, vector<8x32xf32> -> vector<8x32xf32>
    %8 = arith.addf %3, %7 : vector<8x32xf32>
    %c0_8 = arith.constant 0 : index
    %c0_9 = arith.constant 0 : index
    %9 = vector.load %arg3[%c0_8, %c0_9] : memref<8x32xf32, #tpu.memory_space<vmem>>, vector<8x32xf32>
    %10 = arith.truncf %9 : vector<8x32xf32> to vector<8x32xbf16>
    %c0_10 = arith.constant 0 : index
    %c0_11 = arith.constant 0 : index
    %11 = vector.load %arg6[%c0_10, %c0_11] : memref<32x32xbf16, #tpu.memory_space<vmem>>, vector<32x32xbf16>
    %cst_12 = arith.constant dense<0.000000e+00> : vector<8x32xf32>
    %12 = tpu.matmul %10, %11, %cst_12 {dimension_numbers = #tpu.dot_dimension_numbers<[1], [0], [0], [1], [0, 0, 1, 1], [], []>} : vector<8x32xbf16>, vector<32x32xbf16>, vector<8x32xf32> -> vector<8x32xf32>
    %13 = arith.addf %8, %12 : vector<8x32xf32>
    %c0_13 = arith.constant 0 : index
    %c0_14 = arith.constant 0 : index
    %14 = vector.load %arg7[%c0_13, %c0_14] : memref<1x32xf32, #tpu.memory_space<vmem>>, vector<1x32xf32>
    %15 = vector.broadcast %14 : vector<1x32xf32> to vector<8x32xf32>
    %16 = arith.addf %13, %15 : vector<8x32xf32>
    %cst_15 = arith.constant 0.000000e+00 : f32
    %17 = vector.broadcast %cst_15 : f32 to vector<8x32xf32>
    %18 = arith.maximumf %16, %17 : vector<8x32xf32>
    %19 = arith.truncf %18 : vector<8x32xf32> to vector<8x32xbf16>
    %c0_16 = arith.constant 0 : index
    %c0_17 = arith.constant 0 : index
    %20 = vector.load %arg8[%c0_16, %c0_17] : memref<32x32xbf16, #tpu.memory_space<vmem>>, vector<32x32xbf16>
    %cst_18 = arith.constant dense<0.000000e+00> : vector<8x32xf32>
    %21 = tpu.matmul %19, %20, %cst_18 {dimension_numbers = #tpu.dot_dimension_numbers<[1], [0], [0], [1], [0, 0, 1, 1], [], []>} : vector<8x32xbf16>, vector<32x32xbf16>, vector<8x32xf32> -> vector<8x32xf32>
    %c0_19 = arith.constant 0 : index
    %c0_20 = arith.constant 0 : index
    %22 = vector.load %arg9[%c0_19, %c0_20] : memref<1x32xf32, #tpu.memory_space<vmem>>, vector<1x32xf32>
    %23 = vector.broadcast %22 : vector<1x32xf32> to vector<8x32xf32>
    %24 = arith.addf %21, %23 : vector<8x32xf32>
    %cst_21 = arith.constant 0.000000e+00 : f32
    %25 = vector.broadcast %cst_21 : f32 to vector<8x32xf32>
    %26 = arith.maximumf %24, %25 : vector<8x32xf32>
    %27 = arith.truncf %26 : vector<8x32xf32> to vector<8x32xbf16>
    %c0_22 = arith.constant 0 : index
    %c0_23 = arith.constant 0 : index
    %28 = vector.load %arg10[%c0_22, %c0_23] : memref<32x32xbf16, #tpu.memory_space<vmem>>, vector<32x32xbf16>
    %cst_24 = arith.constant dense<0.000000e+00> : vector<8x32xf32>
    %29 = tpu.matmul %27, %28, %cst_24 {dimension_numbers = #tpu.dot_dimension_numbers<[1], [0], [0], [1], [0, 0, 1, 1], [], []>} : vector<8x32xbf16>, vector<32x32xbf16>, vector<8x32xf32> -> vector<8x32xf32>
    %c0_25 = arith.constant 0 : index
    %c0_26 = arith.constant 0 : index
    %30 = vector.load %arg11[%c0_25, %c0_26] : memref<1x32xf32, #tpu.memory_space<vmem>>, vector<1x32xf32>
    %31 = vector.broadcast %30 : vector<1x32xf32> to vector<8x32xf32>
    %32 = arith.addf %29, %31 : vector<8x32xf32>
    %cst_27 = arith.constant 0.000000e+00 : f32
    %33 = vector.broadcast %cst_27 : f32 to vector<8x32xf32>
    %34 = arith.maximumf %32, %33 : vector<8x32xf32>
    %35 = arith.truncf %34 : vector<8x32xf32> to vector<8x32xbf16>
    %c0_28 = arith.constant 0 : index
    %c0_29 = arith.constant 0 : index
    %36 = vector.load %arg12[%c0_28, %c0_29] : memref<32x32xbf16, #tpu.memory_space<vmem>>, vector<32x32xbf16>
    %cst_30 = arith.constant dense<0.000000e+00> : vector<8x32xf32>
    %37 = tpu.matmul %35, %36, %cst_30 {dimension_numbers = #tpu.dot_dimension_numbers<[1], [0], [0], [1], [0, 0, 1, 1], [], []>} : vector<8x32xbf16>, vector<32x32xbf16>, vector<8x32xf32> -> vector<8x32xf32>
    %c0_31 = arith.constant 0 : index
    %c0_32 = arith.constant 0 : index
    %38 = vector.load %arg13[%c0_31, %c0_32] : memref<1x32xf32, #tpu.memory_space<vmem>>, vector<1x32xf32>
    %39 = vector.broadcast %38 : vector<1x32xf32> to vector<8x32xf32>
    %40 = arith.addf %37, %39 : vector<8x32xf32>
    %cst_33 = arith.constant 0.000000e+00 : f32
    %41 = vector.broadcast %cst_33 : f32 to vector<8x32xf32>
    %42 = arith.maximumf %40, %41 : vector<8x32xf32>
    %c0_34 = arith.constant 0 : index
    %c0_35 = arith.constant 0 : index
    %43 = vector.load %arg14[%c0_34, %c0_35] : memref<1x32xbf16, #tpu.memory_space<vmem>>, vector<1x32xbf16>
    %44 = arith.truncf %42 : vector<8x32xf32> to vector<8x32xbf16>
    %cst_36 = arith.constant dense<0.000000e+00> : vector<1x8xf32>
    %45 = tpu.matmul %43, %44, %cst_36 {dimension_numbers = #tpu.dot_dimension_numbers<[1], [1], [0], [0], [0, 0, 1, 0], [], []>} : vector<1x32xbf16>, vector<8x32xbf16>, vector<1x8xf32> -> vector<1x8xf32>
    %c0_37 = arith.constant 0 : index
    %c0_38 = arith.constant 0 : index
    %46 = vector.load %arg15[%c0_37, %c0_38] : memref<1x1xf32, #tpu.memory_space<vmem>>, vector<1x1xf32>
    %47 = vector.broadcast %46 : vector<1x1xf32> to vector<1x8xf32>
    %48 = arith.addf %45, %47 : vector<1x8xf32>
    %c0_39 = arith.constant 0 : index
    %c0_40 = arith.constant 0 : index
    %49 = vector.load %arg16[%c0_39, %c0_40] : memref<1x8xf32, #tpu.memory_space<vmem>>, vector<1x8xf32>
    tpu.vector_store %arg16[%c0_39, %c0_40], %48 {strides = array<i32>} : memref<1x8xf32, #tpu.memory_space<vmem>>, vector<1x8xf32>,
    return
  }
  func.func @transform_0(%arg0: i32) -> (i32, i32) {
    %c0_i32 = arith.constant 0 : i32
    %c0_i32_0 = arith.constant 0 : i32
    return %arg0, %c0_i32 : i32, i32
  }
  func.func @transform_1(%arg0: i32) -> (i32, i32) {
    %c0_i32 = arith.constant 0 : i32
    %c0_i32_0 = arith.constant 0 : i32
    return %arg0, %c0_i32 : i32, i32
  }
  func.func @transform_2(%arg0: i32) -> (i32, i32) {
    %c0_i32 = arith.constant 0 : i32
    %c0_i32_0 = arith.constant 0 : i32
    return %arg0, %c0_i32 : i32, i32
  }
  func.func @transform_3(%arg0: i32) -> (i32, i32) {
    %c0_i32 = arith.constant 0 : i32
    %c0_i32_0 = arith.constant 0 : i32
    %c0_i32_1 = arith.constant 0 : i32
    return %c0_i32, %c0_i32_0 : i32, i32
  }
  func.func @transform_4(%arg0: i32) -> (i32, i32) {
    %c0_i32 = arith.constant 0 : i32
    %c0_i32_0 = arith.constant 0 : i32
    %c0_i32_1 = arith.constant 0 : i32
    return %c0_i32, %c0_i32_0 : i32, i32
  }
  func.func @transform_5(%arg0: i32) -> (i32, i32) {
    %c0_i32 = arith.constant 0 : i32
    %c0_i32_0 = arith.constant 0 : i32
    %c0_i32_1 = arith.constant 0 : i32
    return %c0_i32, %c0_i32_0 : i32, i32
  }
  func.func @transform_6(%arg0: i32) -> (i32, i32) {
    %c0_i32 = arith.constant 0 : i32
    %c0_i32_0 = arith.constant 0 : i32
    %c0_i32_1 = arith.constant 0 : i32
    return %c0_i32, %c0_i32_0 : i32, i32
  }
  func.func @transform_7(%arg0: i32) -> (i32, i32) {
    %c0_i32 = arith.constant 0 : i32
    %c0_i32_0 = arith.constant 0 : i32
    %c0_i32_1 = arith.constant 0 : i32
    return %c0_i32, %c0_i32_0 : i32, i32
  }
  func.func @transform_8(%arg0: i32) -> (i32, i32) {
    %c0_i32 = arith.constant 0 : i32
    %c0_i32_0 = arith.constant 0 : i32
    %c0_i32_1 = arith.constant 0 : i32
    return %c0_i32, %c0_i32_0 : i32, i32
  }
  func.func @transform_9(%arg0: i32) -> (i32, i32) {
    %c0_i32 = arith.constant 0 : i32
    %c0_i32_0 = arith.constant 0 : i32
    %c0_i32_1 = arith.constant 0 : i32
    return %c0_i32, %c0_i32_0 : i32, i32
  }
  func.func @transform_10(%arg0: i32) -> (i32, i32) {
    %c0_i32 = arith.constant 0 : i32
    %c0_i32_0 = arith.constant 0 : i32
    %c0_i32_1 = arith.constant 0 : i32
    return %c0_i32, %c0_i32_0 : i32, i32
  }
  func.func @transform_11(%arg0: i32) -> (i32, i32) {
    %c0_i32 = arith.constant 0 : i32
    %c0_i32_0 = arith.constant 0 : i32
    %c0_i32_1 = arith.constant 0 : i32
    return %c0_i32, %c0_i32_0 : i32, i32
  }
  func.func @transform_12(%arg0: i32) -> (i32, i32) {
    %c0_i32 = arith.constant 0 : i32
    %c0_i32_0 = arith.constant 0 : i32
    %c0_i32_1 = arith.constant 0 : i32
    return %c0_i32, %c0_i32_0 : i32, i32
  }
  func.func @transform_13(%arg0: i32) -> (i32, i32) {
    %c0_i32 = arith.constant 0 : i32
    %c0_i32_0 = arith.constant 0 : i32
    %c0_i32_1 = arith.constant 0 : i32
    return %c0_i32, %c0_i32_0 : i32, i32
  }
  func.func @transform_14(%arg0: i32) -> (i32, i32) {
    %c0_i32 = arith.constant 0 : i32
    %c0_i32_0 = arith.constant 0 : i32
    %c0_i32_1 = arith.constant 0 : i32
    return %c0_i32, %c0_i32_0 : i32, i32
  }
  func.func @transform_15(%arg0: i32) -> (i32, i32) {
    %c0_i32 = arith.constant 0 : i32
    %c0_i32_0 = arith.constant 0 : i32
    return %c0_i32, %arg0 : i32, i32
  }
}

</mosaic_0001>

<llo_original>
// kernel: tpu_custom_call.1
$region0: #{tpu_custom_call.1}
  #allocation0 [shape = 'u32[]', space=smem, size = 0x4, offset = 0x4, fixed_abs, tag = 'smem constant byte address 0x4 - core index']
  #allocation1 [shape = 'u32[144,128]{1,0:T(1,128)}', space=vmem, size = 0x12000, scoped, tag = 'internal scratch']
  #allocation2 [shape = 'f32[1,1]{1,0:T(1,128)S(1)}', space=vmem, size = 0x200, scoped, tag = 'scoped memory for tpu_custom_call.1']
  %s0 = inlined_call_operand.hbm [shape: f32[8,32], index: 0, kind: input, shape index: {}]
  %s1 = inlined_call_operand.hbm [shape: f32[8,32], index: 1, kind: input, shape index: {}]
  %s2 = inlined_call_operand.hbm [shape: f32[8,32], index: 2, kind: input, shape index: {}]
  %s3 = inlined_call_operand.hbm [shape: bf16[32,32], index: 3, kind: input, shape index: {}]
  %s4 = inlined_call_operand.vmem [shape: bf16[32,32], index: 4, kind: input, shape index: {}]
  %s5 = inlined_call_operand.hbm [shape: bf16[32,32], index: 5, kind: input, shape index: {}]
  %s6 = inlined_call_operand.vmem [shape: f32[1,32], index: 6, kind: input, shape index: {}]
  %s7 = inlined_call_operand.hbm [shape: bf16[32,32], index: 7, kind: input, shape index: {}]
  %s8 = inlined_call_operand.vmem [shape: f32[1,32], index: 8, kind: input, shape index: {}]
  %s9 = inlined_call_operand.vmem [shape: bf16[32,32], index: 9, kind: input, shape index: {}]
  %s10 = inlined_call_operand.vmem [shape: f32[1,32], index: 10, kind: input, shape index: {}]
  %s11 = inlined_call_operand.hbm [shape: bf16[32,32], index: 11, kind: input, shape index: {}]
  %s12 = inlined_call_operand.vmem [shape: f32[1,32], index: 12, kind: input, shape index: {}]
  %s13 = inlined_call_operand.vmem [shape: bf16[1,32], index: 13, kind: input, shape index: {}]
  %s14 = inlined_call_operand.<no memory space> [shape: f32[1,1], index: 14, kind: input, shape index: {}]
  %s15 = inlined_call_operand.hbm [shape: f32[1,8], index: 15, kind: output, shape index: {}]
  %s16 = sld [smem:[#allocation0]]
  $region98: #{tpu_custom_call.1} parent=0
    _
  %s18 = ssub.s32 1, %s16
  %s19 = scalar_select 0, %s18, %s16
  %v20 = vstv %s14
  %21 = vst [vmem:[#allocation2] sm:$0x1] %v20
  $region1: #{tpu_custom_call.1} parent=0
    #allocation3 [shape = 'u8[4096]{0}', space=vmem, size = 0x1000, scoped, tag = 'input window, operand 0, single buffered']
    #allocation4 [shape = 's32[1]{0}', space=sflag, size = 0x4, scoped, tag = 'scoped memory for tpu_custom_call.1']
    #allocation5 [shape = 's32[1]{0}', space=sflag, size = 0x4, scoped, tag = 'scoped memory for tpu_custom_call.1']
    #allocation6 [shape = 'u8[4096]{0}', space=vmem, size = 0x1000, scoped, tag = 'input window, operand 1, single buffered']
    #allocation7 [shape = 's32[1]{0}', space=sflag, size = 0x4, scoped, tag = 'scoped memory for tpu_custom_call.1']
    #allocation8 [shape = 'u8[4096]{0}', space=vmem, size = 0x1000, scoped, tag = 'input window, operand 2, single buffered']
    #allocation9 [shape = 'u8[8192]{0}', space=vmem, size = 0x2000, scoped, tag = 'input window, operand 3, single buffered']
    #allocation10 [shape = 's32[1]{0}', space=sflag, size = 0x4, scoped, tag = 'scoped memory for tpu_custom_call.1']
    #allocation11 [shape = 'u8[8192]{0}', space=vmem, size = 0x2000, scoped, tag = 'input window, operand 5, single buffered']
    #allocation12 [shape = 'u8[8192]{0}', space=vmem, size = 0x2000, scoped, tag = 'input window, operand 7, single buffered']
    #allocation13 [shape = 's32[1]{0}', space=sflag, size = 0x4, scoped, tag = 'scoped memory for tpu_custom_call.1']
    #allocation14 [shape = 'u8[8192]{0}', space=vmem, size = 0x2000, scoped, tag = 'input window, operand 11, single buffered']
    #allocation15 [shape = 'u8[512]{0}', space=vmem, size = 0x400, scoped, tag = 'output window, operand 0, single buffered']
    %22 = vsyncpa [#allocation4], 0
    %23 = vsyncpa [#allocation7], 0
    %24 = vsyncpa [#allocation10], 0
    %25 = vsyncpa [#allocation13], 0
    %26 = vsyncpa [#allocation5], 0
    // Predicated region
    $region2: #{tpu_custom_call.1} parent=1 // pred_check
      _
    $region3: #{tpu_custom_call.1} parent=1 // pred_check_branch
      %28 = sbr.rel (0) target = $region5
    $region4: #{tpu_custom_call.1} parent=1 // pred_region
      %s30 = ssub.s32 128, 128
      %31 = vsyncadd [#allocation4], %s30
      %s33 = sshll.u32 [#allocation3], 4
      %s34 = int_to_ptr.vmem [resolvable:$true] %s33
      %36 = dma.hbm_to_vmem [thread:$0]  %s0, 128, %s34, [#allocation4]
    $region5: #{tpu_custom_call.1} parent=1 // pred_fallthru
      _
    // Predicated region
    $region6: #{tpu_custom_call.1} parent=1 // pred_check
      _
    $region7: #{tpu_custom_call.1} parent=1 // pred_check_branch
      %38 = sbr.rel (0) target = $region9
    $region8: #{tpu_custom_call.1} parent=1 // pred_region
      %s40 = ssub.s32 128, 128
      %41 = vsyncadd [#allocation7], %s40
      %s43 = sshll.u32 [#allocation6], 4
      %s44 = int_to_ptr.vmem [resolvable:$true] %s43
      %46 = dma.hbm_to_vmem [thread:$0]  %s1, 128, %s44, [#allocation7]
    $region9: #{tpu_custom_call.1} parent=1 // pred_fallthru
      _
    // Predicated region
    $region10: #{tpu_custom_call.1} parent=1 // pred_check
      _
    $region11: #{tpu_custom_call.1} parent=1 // pred_check_branch
      %48 = sbr.rel (0) target = $region13
    $region12: #{tpu_custom_call.1} parent=1 // pred_region
      %s50 = ssub.s32 128, 128
      %51 = vsyncadd [#allocation7], %s50
      %s53 = sshll.u32 [#allocation8], 4
      %s54 = int_to_ptr.vmem [resolvable:$true] %s53
      %56 = dma.hbm_to_vmem [thread:$0]  %s2, 128, %s54, [#allocation7]
    $region13: #{tpu_custom_call.1} parent=1 // pred_fallthru
      _
    // Predicated region
    $region14: #{tpu_custom_call.1} parent=1 // pred_check
      _
    $region15: #{tpu_custom_call.1} parent=1 // pred_check_branch
      %58 = sbr.rel (0) target = $region17
    $region16: #{tpu_custom_call.1} parent=1 // pred_region
      %s60 = ssub.s32 256, 256
      %61 = vsyncadd [#allocation10], %s60
      %s62 = sshll.u32 [#allocation9], 4
      %s63 = int_to_ptr.vmem [resolvable:$true] %s62
      %68 = dma.hbm_to_vmem [thread:$0]  %s3, 256, %s63, [#allocation10], 64, 64, 4
    $region17: #{tpu_custom_call.1} parent=1 // pred_fallthru
      _
    // Predicated region
    $region18: #{tpu_custom_call.1} parent=1 // pred_check
      _
    $region19: #{tpu_custom_call.1} parent=1 // pred_check_branch
      %70 = sbr.rel (0) target = $region21
    $region20: #{tpu_custom_call.1} parent=1 // pred_region
      _
    $region21: #{tpu_custom_call.1} parent=1 // pred_fallthru
      _
    // Predicated region
    $region22: #{tpu_custom_call.1} parent=1 // pred_check
      _
    $region23: #{tpu_custom_call.1} parent=1 // pred_check_branch
      %72 = sbr.rel (0) target = $region25
    $region24: #{tpu_custom_call.1} parent=1 // pred_region
      %s74 = ssub.s32 256, 256
      %75 = vsyncadd [#allocation10], %s74
      %s76 = sshll.u32 [#allocation11], 4
      %s77 = int_to_ptr.vmem [resolvable:$true] %s76
      %82 = dma.hbm_to_vmem [thread:$0]  %s5, 256, %s77, [#allocation10], 64, 64, 4
    $region25: #{tpu_custom_call.1} parent=1 // pred_fallthru
      _
    // Predicated region
    $region26: #{tpu_custom_call.1} parent=1 // pred_check
      _
    $region27: #{tpu_custom_call.1} parent=1 // pred_check_branch
      %84 = sbr.rel (0) target = $region29
    $region28: #{tpu_custom_call.1} parent=1 // pred_region
      _
    $region29: #{tpu_custom_call.1} parent=1 // pred_fallthru
      _
    // Predicated region
    $region30: #{tpu_custom_call.1} parent=1 // pred_check
      _
    $region31: #{tpu_custom_call.1} parent=1 // pred_check_branch
      %86 = sbr.rel (0) target = $region33
    $region32: #{tpu_custom_call.1} parent=1 // pred_region
      %s88 = ssub.s32 256, 256
      %89 = vsyncadd [#allocation13], %s88
      %s90 = sshll.u32 [#allocation12], 4
      %s91 = int_to_ptr.vmem [resolvable:$true] %s90
      %96 = dma.hbm_to_vmem [thread:$0]  %s7, 256, %s91, [#allocation13], 64, 64, 4
    $region33: #{tpu_custom_call.1} parent=1 // pred_fallthru
      _
    // Predicated region
    $region34: #{tpu_custom_call.1} parent=1 // pred_check
      _
    $region35: #{tpu_custom_call.1} parent=1 // pred_check_branch
      %98 = sbr.rel (0) target = $region37
    $region36: #{tpu_custom_call.1} parent=1 // pred_region
      _
    $region37: #{tpu_custom_call.1} parent=1 // pred_fallthru
      _
    // Predicated region
    $region38: #{tpu_custom_call.1} parent=1 // pred_check
      _
    $region39: #{tpu_custom_call.1} parent=1 // pred_check_branch
      %100 = sbr.rel (0) target = $region41
    $region40: #{tpu_custom_call.1} parent=1 // pred_region
      _
    $region41: #{tpu_custom_call.1} parent=1 // pred_fallthru
      _
    // Predicated region
    $region42: #{tpu_custom_call.1} parent=1 // pred_check
      _
    $region43: #{tpu_custom_call.1} parent=1 // pred_check_branch
      %102 = sbr.rel (0) target = $region45
    $region44: #{tpu_custom_call.1} parent=1 // pred_region
      _
    $region45: #{tpu_custom_call.1} parent=1 // pred_fallthru
      _
    // Predicated region
    $region46: #{tpu_custom_call.1} parent=1 // pred_check
      _
    $region47: #{tpu_custom_call.1} parent=1 // pred_check_branch
      %104 = sbr.rel (0) target = $region49
    $region48: #{tpu_custom_call.1} parent=1 // pred_region
      %s106 = ssub.s32 256, 256
      %107 = vsyncadd [#allocation13], %s106
      %s108 = sshll.u32 [#allocation14], 4
      %s109 = int_to_ptr.vmem [resolvable:$true] %s108
      %114 = dma.hbm_to_vmem [thread:$0]  %s11, 256, %s109, [#allocation13], 64, 64, 4
    $region49: #{tpu_custom_call.1} parent=1 // pred_fallthru
      _
    // Predicated region
    $region50: #{tpu_custom_call.1} parent=1 // pred_check
      _
    $region51: #{tpu_custom_call.1} parent=1 // pred_check_branch
      %116 = sbr.rel (0) target = $region53
    $region52: #{tpu_custom_call.1} parent=1 // pred_region
      _
    $region53: #{tpu_custom_call.1} parent=1 // pred_fallthru
      _
    // Predicated region
    $region54: #{tpu_custom_call.1} parent=1 // pred_check
      _
    $region55: #{tpu_custom_call.1} parent=1 // pred_check_branch
      %118 = sbr.rel (0) target = $region57
    $region56: #{tpu_custom_call.1} parent=1 // pred_region
      _
    $region57: #{tpu_custom_call.1} parent=1 // pred_fallthru
      _
    // Predicated region
    $region58: #{tpu_custom_call.1} parent=1 // pred_check
      _
    $region59: #{tpu_custom_call.1} parent=1 // pred_check_branch
      %120 = sbr.rel (0) target = $region61
    $region60: #{tpu_custom_call.1} parent=1 // pred_region
      _
    $region61: #{tpu_custom_call.1} parent=1 // pred_fallthru
      _
    // Predicated region
    $region62: #{tpu_custom_call.1} parent=1 // pred_check
      _
    $region63: #{tpu_custom_call.1} parent=1 // pred_check_branch
      %122 = sbr.rel (0) target = $region65
    $region64: #{tpu_custom_call.1} parent=1 // pred_region
      %123 = dma.done [#allocation4], 128
    $region65: #{tpu_custom_call.1} parent=1 // pred_fallthru
      _
    // Predicated region
    $region66: #{tpu_custom_call.1} parent=1 // pred_check
      _
    $region67: #{tpu_custom_call.1} parent=1 // pred_check_branch
      %125 = sbr.rel (0) target = $region69
    $region68: #{tpu_custom_call.1} parent=1 // pred_region
      %126 = dma.done [#allocation7], 128
    $region69: #{tpu_custom_call.1} parent=1 // pred_fallthru
      _
    // Predicated region
    $region70: #{tpu_custom_call.1} parent=1 // pred_check
      _
    $region71: #{tpu_custom_call.1} parent=1 // pred_check_branch
      %128 = sbr.rel (0) target = $region73
    $region72: #{tpu_custom_call.1} parent=1 // pred_region
      %129 = dma.done [#allocation7], 128
    $region73: #{tpu_custom_call.1} parent=1 // pred_fallthru
      _
    // Predicated region
    $region74: #{tpu_custom_call.1} parent=1 // pred_check
      _
    $region75: #{tpu_custom_call.1} parent=1 // pred_check_branch
      %131 = sbr.rel (0) target = $region77
    $region76: #{tpu_custom_call.1} parent=1 // pred_region
      %132 = dma.done [#allocation10], 256
    $region77: #{tpu_custom_call.1} parent=1 // pred_fallthru
      _
    // Predicated region
    $region78: #{tpu_custom_call.1} parent=1 // pred_check
      _
    $region79: #{tpu_custom_call.1} parent=1 // pred_check_branch
      %134 = sbr.rel (0) target = $region81
    $region80: #{tpu_custom_call.1} parent=1 // pred_region
      %135 = dma.done [#allocation10], 256
    $region81: #{tpu_custom_call.1} parent=1 // pred_fallthru
      _
    // Predicated region
    $region82: #{tpu_custom_call.1} parent=1 // pred_check
      _
    $region83: #{tpu_custom_call.1} parent=1 // pred_check_branch
      %137 = sbr.rel (0) target = $region85
    $region84: #{tpu_custom_call.1} parent=1 // pred_region
      %138 = dma.done [#allocation13], 256
    $region85: #{tpu_custom_call.1} parent=1 // pred_fallthru
      _
    // Predicated region
    $region86: #{tpu_custom_call.1} parent=1 // pred_check
      _
    $region87: #{tpu_custom_call.1} parent=1 // pred_check_branch
      %140 = sbr.rel (0) target = $region89
    $region88: #{tpu_custom_call.1} parent=1 // pred_region
      %141 = dma.done [#allocation13], 256
    $region89: #{tpu_custom_call.1} parent=1 // pred_fallthru
      _
    %v143 = vld [vmem:[#allocation3] sm:$0xff]
    %v144 = vpack.c.bf16 %v143, %v143
    %v145 = vld [vmem:[#allocation9] sm:$0xf]
    %v146 = vld [vmem:[#allocation9 + $0x4] sm:$0xf]
    %v147 = vld [vmem:[#allocation9 + $0x8] sm:$0xf]
    %v148 = vld [vmem:[#allocation9 + $0xc] sm:$0xf]
    %v149 = vld [vmem:[#allocation6] sm:$0xff]
    %v150 = vpack.c.bf16 %v149, %v149
    %v151 = vld [vmem:[%s4] sm:$0xf]
    %v152 = vld [vmem:[%s4 + $0x4] sm:$0xf]
    %v153 = vld [vmem:[%s4 + $0x8] sm:$0xf]
    %v154 = vld [vmem:[%s4 + $0xc] sm:$0xf]
    %v159 = vunpack.c.l.b16 %v151
    %v160 = vunpack.c.l.b16 %v152
    %v161 = vunpack.c.l.b16 %v153
    %v162 = vunpack.c.l.b16 %v154
    %v163 = vpack.c.b16 %v160, %v159
    %v164 = vpack.c.b16 %v162, %v161
    %vm167 = vcmask 261120
    %v169 = vsel %vm167, %v150, 0
    %171 = vmatprep.subr.bf16.mxu0 0
    %172 = vmatpush1.bf16.msra.mxu0 %v163
    %173 = vmatprep.subr.bf16.mxu0 0
    %174 = vmatpush1.bf16.msra.mxu0 %v164
    %175 = vmatprep.subr.bf16.mxu0 0
    %176 = vmatpush1.bf16.msra.mxu0 0
    %177 = vmatprep.subr.bf16.mxu0 0
    %178 = vmatpush1.bf16.msra.mxu0 0
    %179 = vmatprep.subr.bf16.mxu0 0
    %180 = vmatpush1.bf16.msra.mxu0 0
    %181 = vmatprep.subr.bf16.mxu0 0
    %182 = vmatpush1.bf16.msra.mxu0 0
    %183 = vmatprep.subr.bf16.mxu0 0
    %184 = vmatpush1.bf16.msra.mxu0 0
    %185 = vmatprep.subr.bf16.mxu0 0
    %186 = vmatpush1.bf16.msra.mxu0 0
    %187 = vmatprep.subr.bf16.mxu0 0
    %188 = vmatpush1.bf16.msra.mxu0 0
    %189 = vmatprep.subr.bf16.mxu0 0
    %190 = vmatpush1.bf16.msra.mxu0 0
    %191 = vmatprep.subr.bf16.mxu0 0
    %192 = vmatpush1.bf16.msra.mxu0 0
    %193 = vmatprep.subr.bf16.mxu0 0
    %194 = vmatpush1.bf16.msra.mxu0 0
    %195 = vmatprep.subr.bf16.mxu0 0
    %196 = vmatpush1.bf16.msra.mxu0 0
    %197 = vmatprep.subr.bf16.mxu0 0
    %198 = vmatpush1.bf16.msra.mxu0 0
    %199 = vmatprep.subr.bf16.mxu0 0
    %200 = vmatpush1.bf16.msra.mxu0 0
    %201 = vmatprep.subr.bf16.mxu0 0
    %202 = vmatpush1.bf16.msra.mxu0 0
    %203 = vmatprep.mubr.bf16.mxu0 0
    %204 = vmatmul.mubr.bf16.gmra.mrb[0].mxu0 %v169
    %v205 = vpop.f32.mrb[0].mxu0
    %v206 = vadd.f32 0.0, %v205
    %v207 = vpop.f32.mrb[0].mxu0
    %v208 = vpop.f32.mrb[0].mxu0
    %v209 = vpop.f32.mrb[0].mxu0
    %210 = vdwg.mxu0
    %v215 = vunpack.c.l.b16 %v145
    %v216 = vunpack.c.l.b16 %v146
    %v217 = vunpack.c.l.b16 %v147
    %v218 = vunpack.c.l.b16 %v148
    %v219 = vpack.c.b16 %v216, %v215
    %v220 = vpack.c.b16 %v218, %v217
    %v224 = vsel %vm167, %v144, 0
    %226 = vmatprep.subr.bf16.mxu0 0
    %227 = vmatpush1.bf16.msra.mxu0 %v219
    %228 = vmatprep.subr.bf16.mxu0 0
    %229 = vmatpush1.bf16.msra.mxu0 %v220
    %230 = vmatprep.subr.bf16.mxu0 0
    %231 = vmatpush1.bf16.msra.mxu0 0
    %232 = vmatprep.subr.bf16.mxu0 0
    %233 = vmatpush1.bf16.msra.mxu0 0
    %234 = vmatprep.subr.bf16.mxu0 0
    %235 = vmatpush1.bf16.msra.mxu0 0
    %236 = vmatprep.subr.bf16.mxu0 0
    %237 = vmatpush1.bf16.msra.mxu0 0
    %238 = vmatprep.subr.bf16.mxu0 0
    %239 = vmatpush1.bf16.msra.mxu0 0
    %240 = vmatprep.subr.bf16.mxu0 0
    %241 = vmatpush1.bf16.msra.mxu0 0
    %242 = vmatprep.subr.bf16.mxu0 0
    %243 = vmatpush1.bf16.msra.mxu0 0
    %244 = vmatprep.subr.bf16.mxu0 0
    %245 = vmatpush1.bf16.msra.mxu0 0
    %246 = vmatprep.subr.bf16.mxu0 0
    %247 = vmatpush1.bf16.msra.mxu0 0
    %248 = vmatprep.subr.bf16.mxu0 0
    %249 = vmatpush1.bf16.msra.mxu0 0
    %250 = vmatprep.subr.bf16.mxu0 0
    %251 = vmatpush1.bf16.msra.mxu0 0
    %252 = vmatprep.subr.bf16.mxu0 0
    %253 = vmatpush1.bf16.msra.mxu0 0
    %254 = vmatprep.subr.bf16.mxu0 0
    %255 = vmatpush1.bf16.msra.mxu0 0
    %256 = vmatprep.subr.bf16.mxu0 0
    %257 = vmatpush1.bf16.msra.mxu0 0
    %258 = vmatprep.mubr.bf16.mxu0 0
    %259 = vmatmul.mubr.bf16.gmra.mrb[0].mxu0 %v224
    %v260 = vpop.f32.mrb[0].mxu0
    %v261 = vadd.f32 %v206, %v260
    %v262 = vpop.f32.mrb[0].mxu0
    %v263 = vpop.f32.mrb[0].mxu0
    %v264 = vpop.f32.mrb[0].mxu0
    %265 = vdwg.mxu0
    %v266 = vld [vmem:[#allocation8] sm:$0xff]
    %v267 = vpack.c.bf16 %v266, %v266
    %v268 = vld [vmem:[#allocation11] sm:$0xf]
    %v269 = vld [vmem:[#allocation11 + $0x4] sm:$0xf]
    %v270 = vld [vmem:[#allocation11 + $0x8] sm:$0xf]
    %v271 = vld [vmem:[#allocation11 + $0xc] sm:$0xf]
    %v276 = vunpack.c.l.b16 %v268
    %v277 = vunpack.c.l.b16 %v269
    %v278 = vunpack.c.l.b16 %v270
    %v279 = vunpack.c.l.b16 %v271
    %v280 = vpack.c.b16 %v277, %v276
    %v281 = vpack.c.b16 %v279, %v278
    %v285 = vsel %vm167, %v267, 0
    %287 = vmatprep.subr.bf16.mxu0 0
    %288 = vmatpush1.bf16.msra.mxu0 %v280
    %289 = vmatprep.subr.bf16.mxu0 0
    %290 = vmatpush1.bf16.msra.mxu0 %v281
    %291 = vmatprep.subr.bf16.mxu0 0
    %292 = vmatpush1.bf16.msra.mxu0 0
    %293 = vmatprep.subr.bf16.mxu0 0
    %294 = vmatpush1.bf16.msra.mxu0 0
    %295 = vmatprep.subr.bf16.mxu0 0
    %296 = vmatpush1.bf16.msra.mxu0 0
    %297 = vmatprep.subr.bf16.mxu0 0
    %298 = vmatpush1.bf16.msra.mxu0 0
    %299 = vmatprep.subr.bf16.mxu0 0
    %300 = vmatpush1.bf16.msra.mxu0 0
    %301 = vmatprep.subr.bf16.mxu0 0
    %302 = vmatpush1.bf16.msra.mxu0 0
    %303 = vmatprep.subr.bf16.mxu0 0
    %304 = vmatpush1.bf16.msra.mxu0 0
    %305 = vmatprep.subr.bf16.mxu0 0
    %306 = vmatpush1.bf16.msra.mxu0 0
    %307 = vmatprep.subr.bf16.mxu0 0
    %308 = vmatpush1.bf16.msra.mxu0 0
    %309 = vmatprep.subr.bf16.mxu0 0
    %310 = vmatpush1.bf16.msra.mxu0 0
    %311 = vmatprep.subr.bf16.mxu0 0
    %312 = vmatpush1.bf16.msra.mxu0 0
    %313 = vmatprep.subr.bf16.mxu0 0
    %314 = vmatpush1.bf16.msra.mxu0 0
    %315 = vmatprep.subr.bf16.mxu0 0
    %316 = vmatpush1.bf16.msra.mxu0 0
    %317 = vmatprep.subr.bf16.mxu0 0
    %318 = vmatpush1.bf16.msra.mxu0 0
    %319 = vmatprep.mubr.bf16.mxu0 0
    %320 = vmatmul.mubr.bf16.gmra.mrb[0].mxu0 %v285
    %v321 = vpop.f32.mrb[0].mxu0
    %v322 = vadd.f32 0.0, %v321
    %v323 = vpop.f32.mrb[0].mxu0
    %v324 = vpop.f32.mrb[0].mxu0
    %v325 = vpop.f32.mrb[0].mxu0
    %326 = vdwg.mxu0
    %v327 = vadd.f32 %v261, %v322
    %v328 = vld [vmem:[%s6] sm:$0x1]
    %v330 = vlaneseq
    %v331 = vshrl.u32 %v330, 7
    %v332 = vsub.s32 0, %v331
    %v333 = vrot.slane %v328, %v332
    %v335 = vadd.f32 %v327, %v333
    %v336 = vmax.f32 %v335, 0.0
    %v337 = vpack.c.bf16 %v336, %v336
    %v338 = vld [vmem:[#allocation12] sm:$0xf]
    %v339 = vld [vmem:[#allocation12 + $0x4] sm:$0xf]
    %v340 = vld [vmem:[#allocation12 + $0x8] sm:$0xf]
    %v341 = vld [vmem:[#allocation12 + $0xc] sm:$0xf]
    %v342 = vld [vmem:[%s8] sm:$0x1]
    %v344 = vlaneseq
    %v345 = vshrl.u32 %v344, 7
    %v346 = vsub.s32 0, %v345
    %v347 = vrot.slane %v342, %v346
    %v353 = vunpack.c.l.b16 %v338
    %v354 = vunpack.c.l.b16 %v339
    %v355 = vunpack.c.l.b16 %v340
    %v356 = vunpack.c.l.b16 %v341
    %v357 = vpack.c.b16 %v354, %v353
    %v358 = vpack.c.b16 %v356, %v355
    %v362 = vsel %vm167, %v337, 0
    %364 = vmatprep.subr.bf16.mxu0 0
    %365 = vmatpush1.bf16.msra.mxu0 %v357
    %366 = vmatprep.subr.bf16.mxu0 0
    %367 = vmatpush1.bf16.msra.mxu0 %v358
    %368 = vmatprep.subr.bf16.mxu0 0
    %369 = vmatpush1.bf16.msra.mxu0 0
    %370 = vmatprep.subr.bf16.mxu0 0
    %371 = vmatpush1.bf16.msra.mxu0 0
    %372 = vmatprep.subr.bf16.mxu0 0
    %373 = vmatpush1.bf16.msra.mxu0 0
    %374 = vmatprep.subr.bf16.mxu0 0
    %375 = vmatpush1.bf16.msra.mxu0 0
    %376 = vmatprep.subr.bf16.mxu0 0
    %377 = vmatpush1.bf16.msra.mxu0 0
    %378 = vmatprep.subr.bf16.mxu0 0
    %379 = vmatpush1.bf16.msra.mxu0 0
    %380 = vmatprep.subr.bf16.mxu0 0
    %381 = vmatpush1.bf16.msra.mxu0 0
    %382 = vmatprep.subr.bf16.mxu0 0
    %383 = vmatpush1.bf16.msra.mxu0 0
    %384 = vmatprep.subr.bf16.mxu0 0
    %385 = vmatpush1.bf16.msra.mxu0 0
    %386 = vmatprep.subr.bf16.mxu0 0
    %387 = vmatpush1.bf16.msra.mxu0 0
    %388 = vmatprep.subr.bf16.mxu0 0
    %389 = vmatpush1.bf16.msra.mxu0 0
    %390 = vmatprep.subr.bf16.mxu0 0
    %391 = vmatpush1.bf16.msra.mxu0 0
    %392 = vmatprep.subr.bf16.mxu0 0
    %393 = vmatpush1.bf16.msra.mxu0 0
    %394 = vmatprep.subr.bf16.mxu0 0
    %395 = vmatpush1.bf16.msra.mxu0 0
    %396 = vmatprep.mubr.bf16.mxu0 0
    %397 = vmatmul.mubr.bf16.gmra.mrb[0].mxu0 %v362
    %v398 = vpop.f32.mrb[0].mxu0
    %v399 = vadd.f32 %v347, %v398
    %v400 = vpop.f32.mrb[0].mxu0
    %v401 = vpop.f32.mrb[0].mxu0
    %v402 = vpop.f32.mrb[0].mxu0
    %403 = vdwg.mxu0
    %v404 = vmax.f32 %v399, 0.0
    %v405 = vpack.c.bf16 %v404, %v404
    %v406 = vld [vmem:[%s9] sm:$0xf]
    %v407 = vld [vmem:[%s9 + $0x4] sm:$0xf]
    %v408 = vld [vmem:[%s9 + $0x8] sm:$0xf]
    %v409 = vld [vmem:[%s9 + $0xc] sm:$0xf]
    %v410 = vld [vmem:[%s10] sm:$0x1]
    %v412 = vlaneseq
    %v413 = vshrl.u32 %v412, 7
    %v414 = vsub.s32 0, %v413
    %v415 = vrot.slane %v410, %v414
    %v421 = vunpack.c.l.b16 %v406
    %v422 = vunpack.c.l.b16 %v407
    %v423 = vunpack.c.l.b16 %v408
    %v424 = vunpack.c.l.b16 %v409
    %v425 = vpack.c.b16 %v422, %v421
    %v426 = vpack.c.b16 %v424, %v423
    %v430 = vsel %vm167, %v405, 0
    %432 = vmatprep.subr.bf16.mxu0 0
    %433 = vmatpush1.bf16.msra.mxu0 %v425
    %434 = vmatprep.subr.bf16.mxu0 0
    %435 = vmatpush1.bf16.msra.mxu0 %v426
    %436 = vmatprep.subr.bf16.mxu0 0
    %437 = vmatpush1.bf16.msra.mxu0 0
    %438 = vmatprep.subr.bf16.mxu0 0
    %439 = vmatpush1.bf16.msra.mxu0 0
    %440 = vmatprep.subr.bf16.mxu0 0
    %441 = vmatpush1.bf16.msra.mxu0 0
    %442 = vmatprep.subr.bf16.mxu0 0
    %443 = vmatpush1.bf16.msra.mxu0 0
    %444 = vmatprep.subr.bf16.mxu0 0
    %445 = vmatpush1.bf16.msra.mxu0 0
    %446 = vmatprep.subr.bf16.mxu0 0
    %447 = vmatpush1.bf16.msra.mxu0 0
    %448 = vmatprep.subr.bf16.mxu0 0
    %449 = vmatpush1.bf16.msra.mxu0 0
    %450 = vmatprep.subr.bf16.mxu0 0
    %451 = vmatpush1.bf16.msra.mxu0 0
    %452 = vmatprep.subr.bf16.mxu0 0
    %453 = vmatpush1.bf16.msra.mxu0 0
    %454 = vmatprep.subr.bf16.mxu0 0
    %455 = vmatpush1.bf16.msra.mxu0 0
    %456 = vmatprep.subr.bf16.mxu0 0
    %457 = vmatpush1.bf16.msra.mxu0 0
    %458 = vmatprep.subr.bf16.mxu0 0
    %459 = vmatpush1.bf16.msra.mxu0 0
    %460 = vmatprep.subr.bf16.mxu0 0
    %461 = vmatpush1.bf16.msra.mxu0 0
    %462 = vmatprep.subr.bf16.mxu0 0
    %463 = vmatpush1.bf16.msra.mxu0 0
    %464 = vmatprep.mubr.bf16.mxu0 0
    %465 = vmatmul.mubr.bf16.gmra.mrb[0].mxu0 %v430
    %v466 = vpop.f32.mrb[0].mxu0
    %v467 = vadd.f32 %v415, %v466
    %v468 = vpop.f32.mrb[0].mxu0
    %v469 = vpop.f32.mrb[0].mxu0
    %v470 = vpop.f32.mrb[0].mxu0
    %471 = vdwg.mxu0
    %v472 = vmax.f32 %v467, 0.0
    %v473 = vpack.c.bf16 %v472, %v472
    %v474 = vld [vmem:[#allocation14] sm:$0xf]
    %v475 = vld [vmem:[#allocation14 + $0x4] sm:$0xf]
    %v476 = vld [vmem:[#allocation14 + $0x8] sm:$0xf]
    %v477 = vld [vmem:[#allocation14 + $0xc] sm:$0xf]
    %v478 = vld [vmem:[%s12] sm:$0x1]
    %v480 = vlaneseq
    %v481 = vshrl.u32 %v480, 7
    %v482 = vsub.s32 0, %v481
    %v483 = vrot.slane %v478, %v482
    %v489 = vunpack.c.l.b16 %v474
    %v490 = vunpack.c.l.b16 %v475
    %v491 = vunpack.c.l.b16 %v476
    %v492 = vunpack.c.l.b16 %v477
    %v493 = vpack.c.b16 %v490, %v489
    %v494 = vpack.c.b16 %v492, %v491
    %v498 = vsel %vm167, %v473, 0
    %500 = vmatprep.subr.bf16.mxu0 0
    %501 = vmatpush1.bf16.msra.mxu0 %v493
    %502 = vmatprep.subr.bf16.mxu0 0
    %503 = vmatpush1.bf16.msra.mxu0 %v494
    %504 = vmatprep.subr.bf16.mxu0 0
    %505 = vmatpush1.bf16.msra.mxu0 0
    %506 = vmatprep.subr.bf16.mxu0 0
    %507 = vmatpush1.bf16.msra.mxu0 0
    %508 = vmatprep.subr.bf16.mxu0 0
    %509 = vmatpush1.bf16.msra.mxu0 0
    %510 = vmatprep.subr.bf16.mxu0 0
    %511 = vmatpush1.bf16.msra.mxu0 0
    %512 = vmatprep.subr.bf16.mxu0 0
    %513 = vmatpush1.bf16.msra.mxu0 0
    %514 = vmatprep.subr.bf16.mxu0 0
    %515 = vmatpush1.bf16.msra.mxu0 0
    %516 = vmatprep.subr.bf16.mxu0 0
    %517 = vmatpush1.bf16.msra.mxu0 0
    %518 = vmatprep.subr.bf16.mxu0 0
    %519 = vmatpush1.bf16.msra.mxu0 0
    %520 = vmatprep.subr.bf16.mxu0 0
    %521 = vmatpush1.bf16.msra.mxu0 0
    %522 = vmatprep.subr.bf16.mxu0 0
    %523 = vmatpush1.bf16.msra.mxu0 0
    %524 = vmatprep.subr.bf16.mxu0 0
    %525 = vmatpush1.bf16.msra.mxu0 0
    %526 = vmatprep.subr.bf16.mxu0 0
    %527 = vmatpush1.bf16.msra.mxu0 0
    %528 = vmatprep.subr.bf16.mxu0 0
    %529 = vmatpush1.bf16.msra.mxu0 0
    %530 = vmatprep.subr.bf16.mxu0 0
    %531 = vmatpush1.bf16.msra.mxu0 0
    %532 = vmatprep.mubr.bf16.mxu0 0
    %533 = vmatmul.mubr.bf16.gmra.mrb[0].mxu0 %v498
    %v534 = vpop.f32.mrb[0].mxu0
    %v535 = vadd.f32 %v483, %v534
    %v536 = vpop.f32.mrb[0].mxu0
    %v537 = vpop.f32.mrb[0].mxu0
    %v538 = vpop.f32.mrb[0].mxu0
    %539 = vdwg.mxu0
    %v540 = vmax.f32 %v535, 0.0
    %v541 = vld [vmem:[%s13] sm:$0x1]
    %v542 = vpack.c.bf16 %v540, %v540
    %v543 = vld [vmem:[#allocation2] sm:$0x1]
    %545 = vset.pattern.permute.xlu0 0
    %546 = vperm.xlu0 %545, %v543
    %v547 = vpop.permute.xlu0 %546
    %v549 = vlaneseq
    %v550 = vshrl.u32 %v549, 7
    %v551 = vsub.s32 0, %v550
    %v552 = vrot.slane %v547, %v551
    %v554 = vsel %vm167, %v541, 0
    %v557 = vsel %vm167, %v542, 0
    %559 = vmatprep.subr.bf16.mxu0 0
    %560 = vmatpush1.bf16.xpose.msra.mxu0 %v557
    %561 = vmatprep.subr.bf16.mxu0 0
    %562 = vmatpush1.bf16.xpose.msra.mxu0 0
    %563 = vmatprep.subr.bf16.mxu0 0
    %564 = vmatpush1.bf16.xpose.msra.mxu0 0
    %565 = vmatprep.subr.bf16.mxu0 0
    %566 = vmatpush1.bf16.xpose.msra.mxu0 0
    %567 = vmatprep.subr.bf16.mxu0 0
    %568 = vmatpush1.bf16.xpose.msra.mxu0 0
    %569 = vmatprep.subr.bf16.mxu0 0
    %570 = vmatpush1.bf16.xpose.msra.mxu0 0
    %571 = vmatprep.subr.bf16.mxu0 0
    %572 = vmatpush1.bf16.xpose.msra.mxu0 0
    %573 = vmatprep.subr.bf16.mxu0 0
    %574 = vmatpush1.bf16.xpose.msra.mxu0 0
    %575 = vmatprep.subr.bf16.mxu0 0
    %576 = vmatpush1.bf16.xpose.msra.mxu0 0
    %577 = vmatprep.subr.bf16.mxu0 0
    %578 = vmatpush1.bf16.xpose.msra.mxu0 0
    %579 = vmatprep.subr.bf16.mxu0 0
    %580 = vmatpush1.bf16.xpose.msra.mxu0 0
    %581 = vmatprep.subr.bf16.mxu0 0
    %582 = vmatpush1.bf16.xpose.msra.mxu0 0
    %583 = vmatprep.subr.bf16.mxu0 0
    %584 = vmatpush1.bf16.xpose.msra.mxu0 0
    %585 = vmatprep.subr.bf16.mxu0 0
    %586 = vmatpush1.bf16.xpose.msra.mxu0 0
    %587 = vmatprep.subr.bf16.mxu0 0
    %588 = vmatpush1.bf16.xpose.msra.mxu0 0
    %589 = vmatprep.subr.bf16.mxu0 0
    %590 = vmatpush1.bf16.xpose.msra.mxu0 0
    %591 = vmatprep.mubr.bf16.mxu0 0
    %592 = vmatmul.mubr.bf16.gmra.mrb[0].mxu0 %v554
    %v593 = vpop.f32.mrb[0].mxu0
    %v594 = vadd.f32 %v552, %v593
    %v595 = vpop.f32.mrb[0].mxu0
    %v596 = vpop.f32.mrb[0].mxu0
    %v597 = vpop.f32.mrb[0].mxu0
    %598 = vdwg.mxu0
    %vm599 = vcmask 57344
    %600 = vst.msk [vmem:[#allocation15] sm:$0x1] %vm599, %v594
    // Predicated region
    $region90: #{tpu_custom_call.1} parent=1 // pred_check
      _
    $region91: #{tpu_custom_call.1} parent=1 // pred_check_branch
      %602 = sbr.rel (0) target = $region93
    $region92: #{tpu_custom_call.1} parent=1 // pred_region
      %s604 = ssub.s32 16, 16
      %605 = vsyncadd [#allocation5], %s604
      %s607 = sshll.u32 [#allocation15], 4
      %s608 = int_to_ptr.vmem [resolvable:$true] %s607
      %610 = dma.vmem_to_hbm [thread:$0]  %s608, 16, %s15, [#allocation5]
    $region93: #{tpu_custom_call.1} parent=1 // pred_fallthru
      _
    // Predicated region
    $region94: #{tpu_custom_call.1} parent=1 // pred_check
      _
    $region95: #{tpu_custom_call.1} parent=1 // pred_check_branch
      %612 = sbr.rel (0) target = $region97
    $region96: #{tpu_custom_call.1} parent=1 // pred_region
      %613 = dma.done [#allocation5], 16
    $region97: #{tpu_custom_call.1} parent=1 // pred_fallthru
      _
    %614 = vsyncpa [#allocation4], 1
    %615 = vsyncpa [#allocation7], 1
    %616 = vsyncpa [#allocation10], 1
    %617 = vsyncpa [#allocation13], 1
    %618 = vsyncpa [#allocation5], 1

</llo_original>
